<compile_context>
chip_gen: v5e
topology: v5e:2x2
jax: 0.10.0
libtpu: 0.0.40
codegen_flags: <defaults>
</compile_context>

<pallas_src>
import functools

import jax
import jax.numpy as jnp
from jax.experimental import pallas as pl
from jax.experimental.pallas import tpu as pltpu


def _round_up(x, m):
    return ((x + m - 1) // m) * m


def graphconv_kernel(a_ref, m_ref, w_ref, b_ref, o_ref, acc_ref, *, apply_relu):
    """One GraphConv layer: out = act((A @ M) @ W + b), tiled over A.

    grid = (N_pad // tm, N_pad // tk); axis 1 (k) is the reduction over A's
    columns / M's rows.  acc_ref is an f32 (tm, F_in_pad) accumulator.
    """
    k = pl.program_id(1)

    @pl.when(k == 0)
    def _init():
        acc_ref[...] = jnp.zeros_like(acc_ref)

    # Dominant O(N^2 * F) propagation matmul: bf16 on the MXU, f32 accumulate.
    acc_ref[...] += jnp.dot(
        a_ref[...], m_ref[...], preferred_element_type=jnp.float32
    )

    @pl.when(k == pl.num_programs(1) - 1)
    def _finalize():
        # Small feature transform + epilogue (bias, ReLU) in f32.
        h = jnp.dot(
            acc_ref[...].astype(jnp.bfloat16),
            w_ref[...],
            preferred_element_type=jnp.float32,
        )
        h = h + b_ref[...]
        if apply_relu:
            h = jnp.maximum(h, 0.0)
        o_ref[...] = h.astype(o_ref.dtype)


def _graphconv(a_bf16, m_bf16, w_bf16, b_f32, *, apply_relu, out_dtype, tm, tk):
    n_pad = a_bf16.shape[0]
    f_in = m_bf16.shape[1]
    f_out = w_bf16.shape[1]
    grid = (n_pad // tm, n_pad // tk)

    out_bytes = jnp.dtype(out_dtype).itemsize
    # double-buffered input tiles + resident weight/bias/output/accumulator
    tile_vmem = (
        2 * tm * tk * 2          # A tile (bf16), double-buffered
        + 2 * tk * f_in * 2      # feature tile (bf16), double-buffered
        + 2 * f_in * f_out * 2   # W (resident)
        + 2 * f_out * 4          # bias
        + 2 * tm * f_out * out_bytes  # output tile
        + tm * f_in * 4          # f32 accumulator scratch
    )
    vmem_limit = int(min(96 << 20, 2 * tile_vmem + (16 << 20)))

    flops = 2 * n_pad * n_pad * f_in + 2 * n_pad * f_in * f_out
    bytes_accessed = (
        n_pad * n_pad * 2                # A (bf16)
        + grid[0] * n_pad * f_in * 2     # features re-read once per row block
        + f_in * f_out * 2               # W
        + n_pad * f_out * out_bytes      # output
    )

    kernel = functools.partial(graphconv_kernel, apply_relu=apply_relu)

    return pl.pallas_call(
        kernel,
        out_shape=jax.ShapeDtypeStruct((n_pad, f_out), out_dtype),
        grid_spec=pltpu.PrefetchScalarGridSpec(
            num_scalar_prefetch=0,
            grid=grid,
            in_specs=[
                pl.BlockSpec((tm, tk), lambda i, k: (i, k)),        # A tile
                pl.BlockSpec((tk, f_in), lambda i, k: (k, 0)),      # feature rows
                pl.BlockSpec((f_in, f_out), lambda i, k: (0, 0)),   # W (resident)
                pl.BlockSpec((1, f_out), lambda i, k: (0, 0)),      # bias
            ],
            out_specs=pl.BlockSpec((tm, f_out), lambda i, k: (i, 0)),
            scratch_shapes=[pltpu.VMEM((tm, f_in), jnp.float32)],
        ),
        compiler_params=pltpu.CompilerParams(
            dimension_semantics=("parallel", "arbitrary"),
            vmem_limit_bytes=vmem_limit,
        ),
        cost_estimate=pl.CostEstimate(
            flops=int(flops), transcendentals=0, bytes_accessed=int(bytes_accessed)
        ),
    )(a_bf16, m_bf16, w_bf16, b_f32)


def gcn_forward(a_norm, x, w1, b1, w2, b2):
    """Two-layer GCN forward matching the PyTorch/DGL module semantics."""
    n, in_feats = x.shape
    hidden = w1.shape[1]
    out_feats = w2.shape[1]

    # Pad node count and all feature dims to lane-friendly multiples of 128.
    n_pad = _round_up(n, 128)
    fin_pad = _round_up(in_feats, 128)
    hid_pad = _round_up(hidden, 128)
    out_pad = _round_up(out_feats, 128)

    # A-propagation tile sizes: tm<=256, tk<=512 keeps the double-buffered
    # working set around 1 MiB -> safe on v7x's 64 MiB VMEM and on the 16/32
    # MiB default scoped limits, while still deep enough to pipeline DMAs.
    tm = 256 if n_pad % 256 == 0 else 128
    if n_pad % 512 == 0:
        tk = 512
    elif n_pad % 256 == 0:
        tk = 256
    else:
        tk = 128

    def pad2(arr, r, c):
        return jnp.pad(
            arr.astype(jnp.float32),
            ((0, r - arr.shape[0]), (0, c - arr.shape[1])),
        )

    a_p = pad2(a_norm, n_pad, n_pad).astype(jnp.bfloat16)
    x_p = pad2(x, n_pad, fin_pad).astype(jnp.bfloat16)
    w1_p = pad2(w1, fin_pad, hid_pad).astype(jnp.bfloat16)
    w2_p = pad2(w2, hid_pad, out_pad).astype(jnp.bfloat16)
    b1_p = jnp.pad(b1.astype(jnp.float32), (0, hid_pad - hidden)).reshape(1, hid_pad)
    b2_p = jnp.pad(b2.astype(jnp.float32), (0, out_pad - out_feats)).reshape(1, out_pad)

    # Layer 1: H1 = relu((A @ X) @ W1 + b1); H1 kept bf16 to feed layer-2 MXU.
    h1 = _graphconv(a_p, x_p, w1_p, b1_p, apply_relu=True,
                    out_dtype=jnp.bfloat16, tm=tm, tk=tk)
    # Layer 2: OUT = (A @ H1) @ W2 + b2, f32 output.
    out = _graphconv(a_p, h1, w2_p, b2_p, apply_relu=False,
                     out_dtype=jnp.float32, tm=tm, tk=tk)
    return out[:n, :out_feats]


def build_normalized_adjacency(n, key):
    """Random symmetric graph with self-loops, D^-1/2 (A+I) D^-1/2 norm
    (DGL GraphConv norm='both' on an undirected graph with self-loops)."""
    upper = jax.random.bernoulli(key, p=0.4, shape=(n, n)).astype(jnp.float32)
    upper = jnp.triu(upper, k=1)
    adj = upper + upper.T + jnp.eye(n, dtype=jnp.float32)
    deg = jnp.sum(adj, axis=1)
    d_inv_sqrt = 1.0 / jnp.sqrt(deg)
    return adj * d_inv_sqrt[:, None] * d_inv_sqrt[None, :]


if __name__ == "__main__":
    key = jax.random.PRNGKey(0)
    k_adj, k_x, k_w1, k_b1, k_w2, k_b2 = jax.random.split(key, 6)

    # Small shapes consistent with the module.
    N = 8
    IN_FEATS = 16
    HIDDEN = 32
    OUT_FEATS = 8

    a_norm = build_normalized_adjacency(N, k_adj)
    x = jax.random.normal(k_x, (N, IN_FEATS), dtype=jnp.float32)

    w1 = jax.random.normal(k_w1, (IN_FEATS, HIDDEN), dtype=jnp.float32) / jnp.sqrt(
        float(IN_FEATS)
    )
    b1 = 0.1 * jax.random.normal(k_b1, (HIDDEN,), dtype=jnp.float32)
    w2 = jax.random.normal(k_w2, (HIDDEN, OUT_FEATS), dtype=jnp.float32) / jnp.sqrt(
        float(HIDDEN)
    )
    b2 = 0.1 * jax.random.normal(k_b2, (OUT_FEATS,), dtype=jnp.float32)

    out = jax.jit(gcn_forward)(a_norm, x, w1, b1, w2, b2)
    out = jax.block_until_ready(out)

    # Pure-JAX reference (same bf16 input rounding, f32 math) for sanity.
    def bf(v):
        return v.astype(jnp.bfloat16).astype(jnp.float32)

    h1_ref = jnp.maximum(bf(a_norm) @ bf(x) @ bf(w1) + b1, 0.0)
    ref = bf(a_norm) @ bf(h1_ref) @ bf(w2) + b2

    assert out.shape == (N, OUT_FEATS)
    assert jnp.allclose(out, ref, atol=2e-2, rtol=2e-2), "mismatch vs reference"

    print("KERNEL_OK")
</pallas_src>

<mosaic_0001>
module attributes {stable_mosaic.version = 11 : i64} {
  func.func @graphconv_kernel(%arg0: i32, %arg1: i32, %arg2: memref<128x128xbf16, #tpu.memory_space<vmem>>, %arg3: memref<128x128xbf16, #tpu.memory_space<vmem>>, %arg4: memref<128x128xbf16, #tpu.memory_space<vmem>>, %arg5: memref<1x128xf32, #tpu.memory_space<vmem>>, %arg6: memref<128x128xf32, #tpu.memory_space<vmem>>, %arg7: memref<128x128xf32, #tpu.memory_space<vmem>>) attributes {dimension_semantics = [#tpu.dimension_semantics<parallel>, #tpu.dimension_semantics<arbitrary>], iteration_bounds = array<i64: 1, 1>, scalar_prefetch = 0 : i64, scratch_operands = 1 : i64, tpu.core_type = #tpu.core_type<tc>, window_params = [{transform_indices = @transform_0, window_bounds = array<i64: 128, 128>}, {transform_indices = @transform_1, window_bounds = array<i64: 128, 128>}, {pipeline_mode = #tpu.pipeline_mode<synchronous>, transform_indices = @transform_2, window_bounds = array<i64: 128, 128>}, {pipeline_mode = #tpu.pipeline_mode<synchronous>, transform_indices = @transform_3, window_bounds = array<i64: 1, 128>}, {transform_indices = @transform_4, window_bounds = array<i64: 128, 128>}]} {
    %c0_i32 = arith.constant 0 : i32
    %0 = arith.cmpi eq, %arg1, %c0_i32 : i32
    %1 = arith.extui %0 : i1 to i32
    %c0_i32_0 = arith.constant 0 : i32
    %2 = arith.cmpi ne, %1, %c0_i32_0 : i32
    scf.if %2 {
      %cst_10 = arith.constant 0.000000e+00 : f32
      %12 = vector.broadcast %cst_10 : f32 to vector<128x128xf32>
      %c0_11 = arith.constant 0 : index
      %c0_12 = arith.constant 0 : index
      %13 = vector.load %arg7[%c0_11, %c0_12] : memref<128x128xf32, #tpu.memory_space<vmem>>, vector<128x128xf32>
      tpu.vector_store %arg7[%c0_11, %c0_12], %12 {strides = array<i32>} : memref<128x128xf32, #tpu.memory_space<vmem>>, vector<128x128xf32>,
    } else {
    }
    %c0 = arith.constant 0 : index
    %c0_1 = arith.constant 0 : index
    %3 = vector.load %arg7[%c0, %c0_1] : memref<128x128xf32, #tpu.memory_space<vmem>>, vector<128x128xf32>
    %c0_2 = arith.constant 0 : index
    %c0_3 = arith.constant 0 : index
    %4 = vector.load %arg2[%c0_2, %c0_3] : memref<128x128xbf16, #tpu.memory_space<vmem>>, vector<128x128xbf16>
    %c0_4 = arith.constant 0 : index
    %c0_5 = arith.constant 0 : index
    %5 = vector.load %arg3[%c0_4, %c0_5] : memref<128x128xbf16, #tpu.memory_space<vmem>>, vector<128x128xbf16>
    %cst = arith.constant dense<0.000000e+00> : vector<128x128xf32>
    %6 = tpu.matmul %4, %5, %cst {dimension_numbers = #tpu.dot_dimension_numbers<[1], [0], [0], [1], [0, 0, 1, 1], [], []>} : vector<128x128xbf16>, vector<128x128xbf16>, vector<128x128xf32> -> vector<128x128xf32>
    %7 = arith.addf %3, %6 : vector<128x128xf32>
    %c0_6 = arith.constant 0 : index
    %c0_7 = arith.constant 0 : index
    %8 = vector.load %arg7[%c0_6, %c0_7] : memref<128x128xf32, #tpu.memory_space<vmem>>, vector<128x128xf32>
    tpu.vector_store %arg7[%c0_6, %c0_7], %7 {strides = array<i32>} : memref<128x128xf32, #tpu.memory_space<vmem>>, vector<128x128xf32>,
    %c0_i32_8 = arith.constant 0 : i32
    %9 = arith.cmpi eq, %arg1, %c0_i32_8 : i32
    %10 = arith.extui %9 : i1 to i32
    %c0_i32_9 = arith.constant 0 : i32
    %11 = arith.cmpi ne, %10, %c0_i32_9 : i32
    scf.if %11 {
      %c0_10 = arith.constant 0 : index
      %c0_11 = arith.constant 0 : index
      %12 = vector.load %arg7[%c0_10, %c0_11] : memref<128x128xf32, #tpu.memory_space<vmem>>, vector<128x128xf32>
      %13 = arith.truncf %12 : vector<128x128xf32> to vector<128x128xbf16>
      %c0_12 = arith.constant 0 : index
      %c0_13 = arith.constant 0 : index
      %14 = vector.load %arg4[%c0_12, %c0_13] : memref<128x128xbf16, #tpu.memory_space<vmem>>, vector<128x128xbf16>
      %cst_14 = arith.constant dense<0.000000e+00> : vector<128x128xf32>
      %15 = tpu.matmul %13, %14, %cst_14 {dimension_numbers = #tpu.dot_dimension_numbers<[1], [0], [0], [1], [0, 0, 1, 1], [], []>} : vector<128x128xbf16>, vector<128x128xbf16>, vector<128x128xf32> -> vector<128x128xf32>
      %c0_15 = arith.constant 0 : index
      %c0_16 = arith.constant 0 : index
      %16 = vector.load %arg5[%c0_15, %c0_16] : memref<1x128xf32, #tpu.memory_space<vmem>>, vector<1x128xf32>
      %17 = vector.broadcast %16 : vector<1x128xf32> to vector<128x128xf32>
      %18 = arith.addf %15, %17 : vector<128x128xf32>
      %c0_17 = arith.constant 0 : index
      %c0_18 = arith.constant 0 : index
      %19 = vector.load %arg6[%c0_17, %c0_18] : memref<128x128xf32, #tpu.memory_space<vmem>>, vector<128x128xf32>
      tpu.vector_store %arg6[%c0_17, %c0_18], %18 {strides = array<i32>} : memref<128x128xf32, #tpu.memory_space<vmem>>, vector<128x128xf32>,
    } else {
    }
    return
  }
  func.func @transform_0(%arg0: i32, %arg1: i32) -> (i32, i32) {
    %c0_i32 = arith.constant 0 : i32
    return %arg0, %arg1 : i32, i32
  }
  func.func @transform_1(%arg0: i32, %arg1: i32) -> (i32, i32) {
    %c0_i32 = arith.constant 0 : i32
    %c0_i32_0 = arith.constant 0 : i32
    return %arg1, %c0_i32 : i32, i32
  }
  func.func @transform_2(%arg0: i32, %arg1: i32) -> (i32, i32) {
    %c0_i32 = arith.constant 0 : i32
    %c0_i32_0 = arith.constant 0 : i32
    %c0_i32_1 = arith.constant 0 : i32
    return %c0_i32, %c0_i32_0 : i32, i32
  }
  func.func @transform_3(%arg0: i32, %arg1: i32) -> (i32, i32) {
    %c0_i32 = arith.constant 0 : i32
    %c0_i32_0 = arith.constant 0 : i32
    %c0_i32_1 = arith.constant 0 : i32
    return %c0_i32, %c0_i32_0 : i32, i32
  }
  func.func @transform_4(%arg0: i32, %arg1: i32) -> (i32, i32) {
    %c0_i32 = arith.constant 0 : i32
    %c0_i32_0 = arith.constant 0 : i32
    return %arg0, %c0_i32 : i32, i32
  }
}

module attributes {stable_mosaic.version = 11 : i64} {
  func.func @graphconv_kernel(%arg0: i32, %arg1: i32, %arg2: memref<128x128xbf16, #tpu.memory_space<vmem>>, %arg3: memref<128x128xbf16, #tpu.memory_space<vmem>>, %arg4: memref<128x128xbf16, #tpu.memory_space<vmem>>, %arg5: memref<1x128xf32, #tpu.memory_space<vmem>>, %arg6: memref<128x128xbf16, #tpu.memory_space<vmem>>, %arg7: memref<128x128xf32, #tpu.memory_space<vmem>>) attributes {dimension_semantics = [#tpu.dimension_semantics<parallel>, #tpu.dimension_semantics<arbitrary>], iteration_bounds = array<i64: 1, 1>, scalar_prefetch = 0 : i64, scratch_operands = 1 : i64, tpu.core_type = #tpu.core_type<tc>, window_params = [{transform_indices = @transform_0, window_bounds = array<i64: 128, 128>}, {transform_indices = @transform_1, window_bounds = array<i64: 128, 128>}, {pipeline_mode = #tpu.pipeline_mode<synchronous>, transform_indices = @transform_2, window_bounds = array<i64: 128, 128>}, {pipeline_mode = #tpu.pipeline_mode<synchronous>, transform_indices = @transform_3, window_bounds = array<i64: 1, 128>}, {transform_indices = @transform_4, window_bounds = array<i64: 128, 128>}]} {
    %c0_i32 = arith.constant 0 : i32
    %0 = arith.cmpi eq, %arg1, %c0_i32 : i32
    %1 = arith.extui %0 : i1 to i32
    %c0_i32_0 = arith.constant 0 : i32
    %2 = arith.cmpi ne, %1, %c0_i32_0 : i32
    scf.if %2 {
      %cst_10 = arith.constant 0.000000e+00 : f32
      %12 = vector.broadcast %cst_10 : f32 to vector<128x128xf32>
      %c0_11 = arith.constant 0 : index
      %c0_12 = arith.constant 0 : index
      %13 = vector.load %arg7[%c0_11, %c0_12] : memref<128x128xf32, #tpu.memory_space<vmem>>, vector<128x128xf32>
      tpu.vector_store %arg7[%c0_11, %c0_12], %12 {strides = array<i32>} : memref<128x128xf32, #tpu.memory_space<vmem>>, vector<128x128xf32>,
    } else {
    }
    %c0 = arith.constant 0 : index
    %c0_1 = arith.constant 0 : index
    %3 = vector.load %arg7[%c0, %c0_1] : memref<128x128xf32, #tpu.memory_space<vmem>>, vector<128x128xf32>
    %c0_2 = arith.constant 0 : index
    %c0_3 = arith.constant 0 : index
    %4 = vector.load %arg2[%c0_2, %c0_3] : memref<128x128xbf16, #tpu.memory_space<vmem>>, vector<128x128xbf16>
    %c0_4 = arith.constant 0 : index
    %c0_5 = arith.constant 0 : index
    %5 = vector.load %arg3[%c0_4, %c0_5] : memref<128x128xbf16, #tpu.memory_space<vmem>>, vector<128x128xbf16>
    %cst = arith.constant dense<0.000000e+00> : vector<128x128xf32>
    %6 = tpu.matmul %4, %5, %cst {dimension_numbers = #tpu.dot_dimension_numbers<[1], [0], [0], [1], [0, 0, 1, 1], [], []>} : vector<128x128xbf16>, vector<128x128xbf16>, vector<128x128xf32> -> vector<128x128xf32>
    %7 = arith.addf %3, %6 : vector<128x128xf32>
    %c0_6 = arith.constant 0 : index
    %c0_7 = arith.constant 0 : index
    %8 = vector.load %arg7[%c0_6, %c0_7] : memref<128x128xf32, #tpu.memory_space<vmem>>, vector<128x128xf32>
    tpu.vector_store %arg7[%c0_6, %c0_7], %7 {strides = array<i32>} : memref<128x128xf32, #tpu.memory_space<vmem>>, vector<128x128xf32>,
    %c0_i32_8 = arith.constant 0 : i32
    %9 = arith.cmpi eq, %arg1, %c0_i32_8 : i32
    %10 = arith.extui %9 : i1 to i32
    %c0_i32_9 = arith.constant 0 : i32
    %11 = arith.cmpi ne, %10, %c0_i32_9 : i32
    scf.if %11 {
      %c0_10 = arith.constant 0 : index
      %c0_11 = arith.constant 0 : index
      %12 = vector.load %arg7[%c0_10, %c0_11] : memref<128x128xf32, #tpu.memory_space<vmem>>, vector<128x128xf32>
      %13 = arith.truncf %12 : vector<128x128xf32> to vector<128x128xbf16>
      %c0_12 = arith.constant 0 : index
      %c0_13 = arith.constant 0 : index
      %14 = vector.load %arg4[%c0_12, %c0_13] : memref<128x128xbf16, #tpu.memory_space<vmem>>, vector<128x128xbf16>
      %cst_14 = arith.constant dense<0.000000e+00> : vector<128x128xf32>
      %15 = tpu.matmul %13, %14, %cst_14 {dimension_numbers = #tpu.dot_dimension_numbers<[1], [0], [0], [1], [0, 0, 1, 1], [], []>} : vector<128x128xbf16>, vector<128x128xbf16>, vector<128x128xf32> -> vector<128x128xf32>
      %c0_15 = arith.constant 0 : index
      %c0_16 = arith.constant 0 : index
      %16 = vector.load %arg5[%c0_15, %c0_16] : memref<1x128xf32, #tpu.memory_space<vmem>>, vector<1x128xf32>
      %17 = vector.broadcast %16 : vector<1x128xf32> to vector<128x128xf32>
      %18 = arith.addf %15, %17 : vector<128x128xf32>
      %cst_17 = arith.constant 0.000000e+00 : f32
      %19 = vector.broadcast %cst_17 : f32 to vector<128x128xf32>
      %20 = arith.maximumf %18, %19 : vector<128x128xf32>
      %21 = arith.truncf %20 : vector<128x128xf32> to vector<128x128xbf16>
      %c0_18 = arith.constant 0 : index
      %c0_19 = arith.constant 0 : index
      %22 = vector.load %arg6[%c0_18, %c0_19] : memref<128x128xbf16, #tpu.memory_space<vmem>>, vector<128x128xbf16>
      tpu.vector_store %arg6[%c0_18, %c0_19], %21 {strides = array<i32>} : memref<128x128xbf16, #tpu.memory_space<vmem>>, vector<128x128xbf16>,
    } else {
    }
    return
  }
  func.func @transform_0(%arg0: i32, %arg1: i32) -> (i32, i32) {
    %c0_i32 = arith.constant 0 : i32
    return %arg0, %arg1 : i32, i32
  }
  func.func @transform_1(%arg0: i32, %arg1: i32) -> (i32, i32) {
    %c0_i32 = arith.constant 0 : i32
    %c0_i32_0 = arith.constant 0 : i32
    return %arg1, %c0_i32 : i32, i32
  }
  func.func @transform_2(%arg0: i32, %arg1: i32) -> (i32, i32) {
    %c0_i32 = arith.constant 0 : i32
    %c0_i32_0 = arith.constant 0 : i32
    %c0_i32_1 = arith.constant 0 : i32
    return %c0_i32, %c0_i32_0 : i32, i32
  }
  func.func @transform_3(%arg0: i32, %arg1: i32) -> (i32, i32) {
    %c0_i32 = arith.constant 0 : i32
    %c0_i32_0 = arith.constant 0 : i32
    %c0_i32_1 = arith.constant 0 : i32
    return %c0_i32, %c0_i32_0 : i32, i32
  }
  func.func @transform_4(%arg0: i32, %arg1: i32) -> (i32, i32) {
    %c0_i32 = arith.constant 0 : i32
    %c0_i32_0 = arith.constant 0 : i32
    return %arg0, %c0_i32 : i32, i32
  }
}

</mosaic_0001>

<llo_original>
// kernel: gcn_forward.2
$region0: #{gcn_forward.2}
  #allocation0 [shape = 'u32[]', space=smem, size = 0x4, offset = 0x4, fixed_abs, tag = 'smem constant byte address 0x4 - core index']
  #allocation1 [shape = 'u32[72,128]{1,0:T(1,128)}', space=vmem, size = 0x9000, scoped, tag = 'internal scratch']
  #allocation2 [shape = 'f32[128,128]{1,0:T(8,128)}', space=vmem, size = 0x10000, scoped, tag = 'scratch operand']
  %s0 = inlined_call_operand.vmem [shape: bf16[128,128], index: 0, kind: input, shape index: {}]
  %s1 = inlined_call_operand.vmem [shape: bf16[128,128], index: 1, kind: input, shape index: {}]
  %s2 = inlined_call_operand.vmem [shape: bf16[128,128], index: 2, kind: input, shape index: {}]
  %s3 = inlined_call_operand.vmem [shape: f32[1,128], index: 3, kind: input, shape index: {}]
  %s4 = inlined_call_operand.vmem [shape: bf16[128,128], index: 4, kind: output, shape index: {}]
  %s5 = sld [smem:[#allocation0]]
  $region34: #{gcn_forward.2} parent=0
    _
  %s7 = ssub.s32 1, %s5
  %s8 = scalar_select 0, %s7, %s5
  // Predicated region
  $region2: #{gcn_forward.2} parent=0 // pred_check
    _
  $region3: #{gcn_forward.2} parent=0 // pred_check_branch
    %10 = sbr.rel (0) target = $region5
  $region4: #{gcn_forward.2} parent=0 // pred_region
    _
  $region5: #{gcn_forward.2} parent=0 // pred_fallthru
    _
  // Predicated region
  $region6: #{gcn_forward.2} parent=0 // pred_check
    _
  $region7: #{gcn_forward.2} parent=0 // pred_check_branch
    %12 = sbr.rel (0) target = $region9
  $region8: #{gcn_forward.2} parent=0 // pred_region
    _
  $region9: #{gcn_forward.2} parent=0 // pred_fallthru
    _
  // Predicated region
  $region10: #{gcn_forward.2} parent=0 // pred_check
    _
  $region11: #{gcn_forward.2} parent=0 // pred_check_branch
    %14 = sbr.rel (0) target = $region13
  $region12: #{gcn_forward.2} parent=0 // pred_region
    _
  $region13: #{gcn_forward.2} parent=0 // pred_fallthru
    _
  // Predicated region
  $region14: #{gcn_forward.2} parent=0 // pred_check
    _
  $region15: #{gcn_forward.2} parent=0 // pred_check_branch
    %16 = sbr.rel (0) target = $region17
  $region16: #{gcn_forward.2} parent=0 // pred_region
    _
  $region17: #{gcn_forward.2} parent=0 // pred_fallthru
    _
  %p17 = scmp.eq.s32.totalorder 0, 0
  // Predicated region
  $region18: #{gcn_forward.2} parent=0 // pred_check
    %p18 = pneg %p17
  $region19: #{gcn_forward.2} parent=0 // pred_check_branch
    %20 = sbr.rel (%p18) target = $region21
  $region20: #{gcn_forward.2} parent=0 // pred_region
    %21 = vst [vmem:[#allocation2] sm:$0xff] 0.0
    %22 = vst [vmem:[#allocation2 + $0x8] sm:$0xff] 0.0
    %23 = vst [vmem:[#allocation2 + $0x10] sm:$0xff] 0.0
    %24 = vst [vmem:[#allocation2 + $0x18] sm:$0xff] 0.0
    %25 = vst [vmem:[#allocation2 + $0x20] sm:$0xff] 0.0
    %26 = vst [vmem:[#allocation2 + $0x28] sm:$0xff] 0.0
    %27 = vst [vmem:[#allocation2 + $0x30] sm:$0xff] 0.0
    %28 = vst [vmem:[#allocation2 + $0x38] sm:$0xff] 0.0
    %29 = vst [vmem:[#allocation2 + $0x40] sm:$0xff] 0.0
    %30 = vst [vmem:[#allocation2 + $0x48] sm:$0xff] 0.0
    %31 = vst [vmem:[#allocation2 + $0x50] sm:$0xff] 0.0
    %32 = vst [vmem:[#allocation2 + $0x58] sm:$0xff] 0.0
    %33 = vst [vmem:[#allocation2 + $0x60] sm:$0xff] 0.0
    %34 = vst [vmem:[#allocation2 + $0x68] sm:$0xff] 0.0
    %35 = vst [vmem:[#allocation2 + $0x70] sm:$0xff] 0.0
    %36 = vst [vmem:[#allocation2 + $0x78] sm:$0xff] 0.0
  $region21: #{gcn_forward.2} parent=0 // pred_fallthru
    _
  %v37 = vld [vmem:[#allocation2] sm:$0xff]
  %v38 = vld [vmem:[#allocation2 + $0x8] sm:$0xff]
  %v39 = vld [vmem:[#allocation2 + $0x10] sm:$0xff]
  %v40 = vld [vmem:[#allocation2 + $0x18] sm:$0xff]
  %v41 = vld [vmem:[#allocation2 + $0x20] sm:$0xff]
  %v42 = vld [vmem:[#allocation2 + $0x28] sm:$0xff]
  %v43 = vld [vmem:[#allocation2 + $0x30] sm:$0xff]
  %v44 = vld [vmem:[#allocation2 + $0x38] sm:$0xff]
  %v45 = vld [vmem:[#allocation2 + $0x40] sm:$0xff]
  %v46 = vld [vmem:[#allocation2 + $0x48] sm:$0xff]
  %v47 = vld [vmem:[#allocation2 + $0x50] sm:$0xff]
  %v48 = vld [vmem:[#allocation2 + $0x58] sm:$0xff]
  %v49 = vld [vmem:[#allocation2 + $0x60] sm:$0xff]
  %v50 = vld [vmem:[#allocation2 + $0x68] sm:$0xff]
  %v51 = vld [vmem:[#allocation2 + $0x70] sm:$0xff]
  %v52 = vld [vmem:[#allocation2 + $0x78] sm:$0xff]
  %v53 = vld [vmem:[%s0] sm:$0xf]
  %v54 = vld [vmem:[%s0 + $0x4] sm:$0xf]
  %v55 = vld [vmem:[%s0 + $0x8] sm:$0xf]
  %v56 = vld [vmem:[%s0 + $0xc] sm:$0xf]
  %v57 = vld [vmem:[%s0 + $0x10] sm:$0xf]
  %v58 = vld [vmem:[%s0 + $0x14] sm:$0xf]
  %v59 = vld [vmem:[%s0 + $0x18] sm:$0xf]
  %v60 = vld [vmem:[%s0 + $0x1c] sm:$0xf]
  %v61 = vld [vmem:[%s0 + $0x20] sm:$0xf]
  %v62 = vld [vmem:[%s0 + $0x24] sm:$0xf]
  %v63 = vld [vmem:[%s0 + $0x28] sm:$0xf]
  %v64 = vld [vmem:[%s0 + $0x2c] sm:$0xf]
  %v65 = vld [vmem:[%s0 + $0x30] sm:$0xf]
  %v66 = vld [vmem:[%s0 + $0x34] sm:$0xf]
  %v67 = vld [vmem:[%s0 + $0x38] sm:$0xf]
  %v68 = vld [vmem:[%s0 + $0x3c] sm:$0xf]
  %v69 = vld [vmem:[%s1] sm:$0xf]
  %v70 = vld [vmem:[%s1 + $0x4] sm:$0xf]
  %v71 = vld [vmem:[%s1 + $0x8] sm:$0xf]
  %v72 = vld [vmem:[%s1 + $0xc] sm:$0xf]
  %v73 = vld [vmem:[%s1 + $0x10] sm:$0xf]
  %v74 = vld [vmem:[%s1 + $0x14] sm:$0xf]
  %v75 = vld [vmem:[%s1 + $0x18] sm:$0xf]
  %v76 = vld [vmem:[%s1 + $0x1c] sm:$0xf]
  %v77 = vld [vmem:[%s1 + $0x20] sm:$0xf]
  %v78 = vld [vmem:[%s1 + $0x24] sm:$0xf]
  %v79 = vld [vmem:[%s1 + $0x28] sm:$0xf]
  %v80 = vld [vmem:[%s1 + $0x2c] sm:$0xf]
  %v81 = vld [vmem:[%s1 + $0x30] sm:$0xf]
  %v82 = vld [vmem:[%s1 + $0x34] sm:$0xf]
  %v83 = vld [vmem:[%s1 + $0x38] sm:$0xf]
  %v84 = vld [vmem:[%s1 + $0x3c] sm:$0xf]
  %v101 = vunpack.c.l.b16 %v53
  %v102 = vunpack.c.l.b16 %v54
  %v103 = vunpack.c.l.b16 %v55
  %v104 = vunpack.c.l.b16 %v56
  %v105 = vunpack.c.l.b16 %v57
  %v106 = vunpack.c.l.b16 %v58
  %v107 = vunpack.c.l.b16 %v59
  %v108 = vunpack.c.l.b16 %v60
  %v109 = vunpack.c.l.b16 %v61
  %v110 = vunpack.c.l.b16 %v62
  %v111 = vunpack.c.l.b16 %v63
  %v112 = vunpack.c.l.b16 %v64
  %v113 = vunpack.c.l.b16 %v65
  %v114 = vunpack.c.l.b16 %v66
  %v115 = vunpack.c.l.b16 %v67
  %v116 = vunpack.c.l.b16 %v68
  %v117 = vpack.c.b16 %v102, %v101
  %v118 = vpack.c.b16 %v104, %v103
  %v119 = vpack.c.b16 %v106, %v105
  %v120 = vpack.c.b16 %v108, %v107
  %v121 = vpack.c.b16 %v110, %v109
  %v122 = vpack.c.b16 %v112, %v111
  %v123 = vpack.c.b16 %v114, %v113
  %v124 = vpack.c.b16 %v116, %v115
  %v149 = vunpack.c.l.b16 %v69
  %v150 = vunpack.c.l.b16 %v70
  %v151 = vunpack.c.l.b16 %v71
  %v152 = vunpack.c.l.b16 %v72
  %v153 = vunpack.c.l.b16 %v73
  %v154 = vunpack.c.l.b16 %v74
  %v155 = vunpack.c.l.b16 %v75
  %v156 = vunpack.c.l.b16 %v76
  %v157 = vunpack.c.l.b16 %v77
  %v158 = vunpack.c.l.b16 %v78
  %v159 = vunpack.c.l.b16 %v79
  %v160 = vunpack.c.l.b16 %v80
  %v161 = vunpack.c.l.b16 %v81
  %v162 = vunpack.c.l.b16 %v82
  %v163 = vunpack.c.l.b16 %v83
  %v164 = vunpack.c.l.b16 %v84
  %v165 = vpack.c.b16 %v150, %v149
  %v166 = vpack.c.b16 %v152, %v151
  %v167 = vpack.c.b16 %v154, %v153
  %v168 = vpack.c.b16 %v156, %v155
  %v169 = vpack.c.b16 %v158, %v157
  %v170 = vpack.c.b16 %v160, %v159
  %v171 = vpack.c.b16 %v162, %v161
  %v172 = vpack.c.b16 %v164, %v163
  %181 = vmatpush.bf16.msra.mxu0 %v172
  %182 = vmatpush.bf16.msra.mxu0 %v171
  %183 = vmatpush.bf16.msra.mxu0 %v170
  %184 = vmatpush.bf16.msra.mxu0 %v169
  %185 = vmatpush.bf16.msra.mxu0 %v168
  %186 = vmatpush.bf16.msra.mxu0 %v167
  %187 = vmatpush.bf16.msra.mxu0 %v166
  %188 = vmatpush.bf16.msra.mxu0 %v165
  %189 = vmatmul.bf16.gmra.mxu0 %v117
  %v190 = vpop.f32.mrf.mxu0
  %v191 = vadd.f32 0.0, %v190
  %v192 = vpop.f32.mrf.mxu0
  %v193 = vadd.f32 0.0, %v192
  %194 = vmatmul.bf16.gmra.mxu0 %v118
  %v195 = vpop.f32.mrf.mxu0
  %v196 = vadd.f32 0.0, %v195
  %v197 = vpop.f32.mrf.mxu0
  %v198 = vadd.f32 0.0, %v197
  %199 = vmatmul.bf16.gmra.mxu0 %v119
  %v200 = vpop.f32.mrf.mxu0
  %v201 = vadd.f32 0.0, %v200
  %v202 = vpop.f32.mrf.mxu0
  %v203 = vadd.f32 0.0, %v202
  %204 = vmatmul.bf16.gmra.mxu0 %v120
  %v205 = vpop.f32.mrf.mxu0
  %v206 = vadd.f32 0.0, %v205
  %v207 = vpop.f32.mrf.mxu0
  %v208 = vadd.f32 0.0, %v207
  %209 = vmatmul.bf16.gmra.mxu0 %v121
  %v210 = vpop.f32.mrf.mxu0
  %v211 = vadd.f32 0.0, %v210
  %v212 = vpop.f32.mrf.mxu0
  %v213 = vadd.f32 0.0, %v212
  %214 = vmatmul.bf16.gmra.mxu0 %v122
  %v215 = vpop.f32.mrf.mxu0
  %v216 = vadd.f32 0.0, %v215
  %v217 = vpop.f32.mrf.mxu0
  %v218 = vadd.f32 0.0, %v217
  %219 = vmatmul.bf16.gmra.mxu0 %v123
  %v220 = vpop.f32.mrf.mxu0
  %v221 = vadd.f32 0.0, %v220
  %v222 = vpop.f32.mrf.mxu0
  %v223 = vadd.f32 0.0, %v222
  %224 = vmatmul.bf16.gmra.mxu0 %v124
  %v225 = vpop.f32.mrf.mxu0
  %v226 = vadd.f32 0.0, %v225
  %v227 = vpop.f32.mrf.mxu0
  %v228 = vadd.f32 0.0, %v227
  %229 = vdwg.mxu0
  %v230 = vadd.f32 %v37, %v191
  %v231 = vadd.f32 %v38, %v193
  %v232 = vadd.f32 %v39, %v196
  %v233 = vadd.f32 %v40, %v198
  %v234 = vadd.f32 %v41, %v201
  %v235 = vadd.f32 %v42, %v203
  %v236 = vadd.f32 %v43, %v206
  %v237 = vadd.f32 %v44, %v208
  %v238 = vadd.f32 %v45, %v211
  %v239 = vadd.f32 %v46, %v213
  %v240 = vadd.f32 %v47, %v216
  %v241 = vadd.f32 %v48, %v218
  %v242 = vadd.f32 %v49, %v221
  %v243 = vadd.f32 %v50, %v223
  %v244 = vadd.f32 %v51, %v226
  %v245 = vadd.f32 %v52, %v228
  %246 = vst [vmem:[#allocation2] sm:$0xff] %v230
  %247 = vst [vmem:[#allocation2 + $0x8] sm:$0xff] %v231
  %248 = vst [vmem:[#allocation2 + $0x10] sm:$0xff] %v232
  %249 = vst [vmem:[#allocation2 + $0x18] sm:$0xff] %v233
  %250 = vst [vmem:[#allocation2 + $0x20] sm:$0xff] %v234
  %251 = vst [vmem:[#allocation2 + $0x28] sm:$0xff] %v235
  %252 = vst [vmem:[#allocation2 + $0x30] sm:$0xff] %v236
  %253 = vst [vmem:[#allocation2 + $0x38] sm:$0xff] %v237
  %254 = vst [vmem:[#allocation2 + $0x40] sm:$0xff] %v238
  %255 = vst [vmem:[#allocation2 + $0x48] sm:$0xff] %v239
  %256 = vst [vmem:[#allocation2 + $0x50] sm:$0xff] %v240
  %257 = vst [vmem:[#allocation2 + $0x58] sm:$0xff] %v241
  %258 = vst [vmem:[#allocation2 + $0x60] sm:$0xff] %v242
  %259 = vst [vmem:[#allocation2 + $0x68] sm:$0xff] %v243
  %260 = vst [vmem:[#allocation2 + $0x70] sm:$0xff] %v244
  %261 = vst [vmem:[#allocation2 + $0x78] sm:$0xff] %v245
  // Predicated region
  $region22: #{gcn_forward.2} parent=0 // pred_check
    %p262 = pneg %p17
  $region23: #{gcn_forward.2} parent=0 // pred_check_branch
    %264 = sbr.rel (%p262) target = $region25
  $region24: #{gcn_forward.2} parent=0 // pred_region
    %v265 = vld [vmem:[#allocation2] sm:$0xff]
    %v266 = vld [vmem:[#allocation2 + $0x8] sm:$0xff]
    %v267 = vld [vmem:[#allocation2 + $0x10] sm:$0xff]
    %v268 = vld [vmem:[#allocation2 + $0x18] sm:$0xff]
    %v269 = vld [vmem:[#allocation2 + $0x20] sm:$0xff]
    %v270 = vld [vmem:[#allocation2 + $0x28] sm:$0xff]
    %v271 = vld [vmem:[#allocation2 + $0x30] sm:$0xff]
    %v272 = vld [vmem:[#allocation2 + $0x38] sm:$0xff]
    %v273 = vld [vmem:[#allocation2 + $0x40] sm:$0xff]
    %v274 = vld [vmem:[#allocation2 + $0x48] sm:$0xff]
    %v275 = vld [vmem:[#allocation2 + $0x50] sm:$0xff]
    %v276 = vld [vmem:[#allocation2 + $0x58] sm:$0xff]
    %v277 = vld [vmem:[#allocation2 + $0x60] sm:$0xff]
    %v278 = vld [vmem:[#allocation2 + $0x68] sm:$0xff]
    %v279 = vld [vmem:[#allocation2 + $0x70] sm:$0xff]
    %v280 = vld [vmem:[#allocation2 + $0x78] sm:$0xff]
    %v281 = vpack.c.bf16 %v266, %v265
    %v282 = vpack.c.bf16 %v268, %v267
    %v283 = vpack.c.bf16 %v270, %v269
    %v284 = vpack.c.bf16 %v272, %v271
    %v285 = vpack.c.bf16 %v274, %v273
    %v286 = vpack.c.bf16 %v276, %v275
    %v287 = vpack.c.bf16 %v278, %v277
    %v288 = vpack.c.bf16 %v280, %v279
    %v289 = vld [vmem:[%s2] sm:$0xf]
    %v290 = vld [vmem:[%s2 + $0x4] sm:$0xf]
    %v291 = vld [vmem:[%s2 + $0x8] sm:$0xf]
    %v292 = vld [vmem:[%s2 + $0xc] sm:$0xf]
    %v293 = vld [vmem:[%s2 + $0x10] sm:$0xf]
    %v294 = vld [vmem:[%s2 + $0x14] sm:$0xf]
    %v295 = vld [vmem:[%s2 + $0x18] sm:$0xf]
    %v296 = vld [vmem:[%s2 + $0x1c] sm:$0xf]
    %v297 = vld [vmem:[%s2 + $0x20] sm:$0xf]
    %v298 = vld [vmem:[%s2 + $0x24] sm:$0xf]
    %v299 = vld [vmem:[%s2 + $0x28] sm:$0xf]
    %v300 = vld [vmem:[%s2 + $0x2c] sm:$0xf]
    %v301 = vld [vmem:[%s2 + $0x30] sm:$0xf]
    %v302 = vld [vmem:[%s2 + $0x34] sm:$0xf]
    %v303 = vld [vmem:[%s2 + $0x38] sm:$0xf]
    %v304 = vld [vmem:[%s2 + $0x3c] sm:$0xf]
    %v305 = vld [vmem:[%s3] sm:$0x1]
    %v307 = vperm.slane %v305, 0
    %v325 = vunpack.c.l.b16 %v289
    %v326 = vunpack.c.l.b16 %v290
    %v327 = vunpack.c.l.b16 %v291
    %v328 = vunpack.c.l.b16 %v292
    %v329 = vunpack.c.l.b16 %v293
    %v330 = vunpack.c.l.b16 %v294
    %v331 = vunpack.c.l.b16 %v295
    %v332 = vunpack.c.l.b16 %v296
    %v333 = vunpack.c.l.b16 %v297
    %v334 = vunpack.c.l.b16 %v298
    %v335 = vunpack.c.l.b16 %v299
    %v336 = vunpack.c.l.b16 %v300
    %v337 = vunpack.c.l.b16 %v301
    %v338 = vunpack.c.l.b16 %v302
    %v339 = vunpack.c.l.b16 %v303
    %v340 = vunpack.c.l.b16 %v304
    %v341 = vpack.c.b16 %v326, %v325
    %v342 = vpack.c.b16 %v328, %v327
    %v343 = vpack.c.b16 %v330, %v329
    %v344 = vpack.c.b16 %v332, %v331
    %v345 = vpack.c.b16 %v334, %v333
    %v346 = vpack.c.b16 %v336, %v335
    %v347 = vpack.c.b16 %v338, %v337
    %v348 = vpack.c.b16 %v340, %v339
    %357 = vmatpush.bf16.msra.mxu0 %v348
    %358 = vmatpush.bf16.msra.mxu0 %v347
    %359 = vmatpush.bf16.msra.mxu0 %v346
    %360 = vmatpush.bf16.msra.mxu0 %v345
    %361 = vmatpush.bf16.msra.mxu0 %v344
    %362 = vmatpush.bf16.msra.mxu0 %v343
    %363 = vmatpush.bf16.msra.mxu0 %v342
    %364 = vmatpush.bf16.msra.mxu0 %v341
    %365 = vmatmul.bf16.gmra.mxu0 %v281
    %v366 = vpop.f32.mrf.mxu0
    %v367 = vadd.f32 %v307, %v366
    %v368 = vpop.f32.mrf.mxu0
    %v369 = vadd.f32 %v307, %v368
    %370 = vmatmul.bf16.gmra.mxu0 %v282
    %v371 = vpop.f32.mrf.mxu0
    %v372 = vadd.f32 %v307, %v371
    %v373 = vpop.f32.mrf.mxu0
    %v374 = vadd.f32 %v307, %v373
    %375 = vmatmul.bf16.gmra.mxu0 %v283
    %v376 = vpop.f32.mrf.mxu0
    %v377 = vadd.f32 %v307, %v376
    %v378 = vpop.f32.mrf.mxu0
    %v379 = vadd.f32 %v307, %v378
    %380 = vmatmul.bf16.gmra.mxu0 %v284
    %v381 = vpop.f32.mrf.mxu0
    %v382 = vadd.f32 %v307, %v381
    %v383 = vpop.f32.mrf.mxu0
    %v384 = vadd.f32 %v307, %v383
    %385 = vmatmul.bf16.gmra.mxu0 %v285
    %v386 = vpop.f32.mrf.mxu0
    %v387 = vadd.f32 %v307, %v386
    %v388 = vpop.f32.mrf.mxu0
    %v389 = vadd.f32 %v307, %v388
    %390 = vmatmul.bf16.gmra.mxu0 %v286
    %v391 = vpop.f32.mrf.mxu0
    %v392 = vadd.f32 %v307, %v391
    %v393 = vpop.f32.mrf.mxu0
    %v394 = vadd.f32 %v307, %v393
    %395 = vmatmul.bf16.gmra.mxu0 %v287
    %v396 = vpop.f32.mrf.mxu0
    %v397 = vadd.f32 %v307, %v396
    %v398 = vpop.f32.mrf.mxu0
    %v399 = vadd.f32 %v307, %v398
    %400 = vmatmul.bf16.gmra.mxu0 %v288
    %v401 = vpop.f32.mrf.mxu0
    %v402 = vadd.f32 %v307, %v401
    %v403 = vpop.f32.mrf.mxu0
    %v404 = vadd.f32 %v307, %v403
    %405 = vdwg.mxu0
    %v406 = vmax.f32 %v367, 0.0
    %v407 = vmax.f32 %v369, 0.0
    %v408 = vmax.f32 %v372, 0.0
    %v409 = vmax.f32 %v374, 0.0
    %v410 = vmax.f32 %v377, 0.0
    %v411 = vmax.f32 %v379, 0.0
    %v412 = vmax.f32 %v382, 0.0
    %v413 = vmax.f32 %v384, 0.0
    %v414 = vmax.f32 %v387, 0.0
    %v415 = vmax.f32 %v389, 0.0
    %v416 = vmax.f32 %v392, 0.0
    %v417 = vmax.f32 %v394, 0.0
    %v418 = vmax.f32 %v397, 0.0
    %v419 = vmax.f32 %v399, 0.0
    %v420 = vmax.f32 %v402, 0.0
    %v421 = vmax.f32 %v404, 0.0
    %v422 = vpack.c.bf16 %v406, %v406
    %v423 = vpack.c.bf16 %v407, %v407
    %v424 = vpack.c.bf16 %v408, %v408
    %v425 = vpack.c.bf16 %v409, %v409
    %v426 = vpack.c.bf16 %v410, %v410
    %v427 = vpack.c.bf16 %v411, %v411
    %v428 = vpack.c.bf16 %v412, %v412
    %v429 = vpack.c.bf16 %v413, %v413
    %v430 = vpack.c.bf16 %v414, %v414
    %v431 = vpack.c.bf16 %v415, %v415
    %v432 = vpack.c.bf16 %v416, %v416
    %v433 = vpack.c.bf16 %v417, %v417
    %v434 = vpack.c.bf16 %v418, %v418
    %v435 = vpack.c.bf16 %v419, %v419
    %v436 = vpack.c.bf16 %v420, %v420
    %v437 = vpack.c.bf16 %v421, %v421
    %438 = vst [vmem:[%s4] sm:$0xf] %v422
    %439 = vst [vmem:[%s4 + $0x4] sm:$0xf] %v423
    %440 = vst [vmem:[%s4 + $0x8] sm:$0xf] %v424
    %441 = vst [vmem:[%s4 + $0xc] sm:$0xf] %v425
    %442 = vst [vmem:[%s4 + $0x10] sm:$0xf] %v426
    %443 = vst [vmem:[%s4 + $0x14] sm:$0xf] %v427
    %444 = vst [vmem:[%s4 + $0x18] sm:$0xf] %v428
    %445 = vst [vmem:[%s4 + $0x1c] sm:$0xf] %v429
    %446 = vst [vmem:[%s4 + $0x20] sm:$0xf] %v430
    %447 = vst [vmem:[%s4 + $0x24] sm:$0xf] %v431
    %448 = vst [vmem:[%s4 + $0x28] sm:$0xf] %v432
    %449 = vst [vmem:[%s4 + $0x2c] sm:$0xf] %v433
    %450 = vst [vmem:[%s4 + $0x30] sm:$0xf] %v434
    %451 = vst [vmem:[%s4 + $0x34] sm:$0xf] %v435
    %452 = vst [vmem:[%s4 + $0x38] sm:$0xf] %v436
    %453 = vst [vmem:[%s4 + $0x3c] sm:$0xf] %v437
  $region25: #{gcn_forward.2} parent=0 // pred_fallthru
    _
  // Predicated region
  $region26: #{gcn_forward.2} parent=0 // pred_check
    _
  $region27: #{gcn_forward.2} parent=0 // pred_check_branch
    %455 = sbr.rel (0) target = $region29
  $region28: #{gcn_forward.2} parent=0 // pred_region
    _
  $region29: #{gcn_forward.2} parent=0 // pred_fallthru
    _
  // Predicated region
  $region30: #{gcn_forward.2} parent=0 // pred_check
    _
  $region31: #{gcn_forward.2} parent=0 // pred_check_branch
    %457 = sbr.rel (0) target = $region33
  $region32: #{gcn_forward.2} parent=0 // pred_region
    _
  $region33: #{gcn_forward.2} parent=0 // pred_fallthru
    _

// kernel: gcn_forward.3
$region0: #{gcn_forward.3}
  #allocation0 [shape = 'u32[]', space=smem, size = 0x4, offset = 0x4, fixed_abs, tag = 'smem constant byte address 0x4 - core index']
  #allocation1 [shape = 'u32[72,128]{1,0:T(1,128)}', space=vmem, size = 0x9000, scoped, tag = 'internal scratch']
  #allocation2 [shape = 'f32[128,128]{1,0:T(8,128)}', space=vmem, size = 0x10000, scoped, tag = 'scratch operand']
  %s0 = inlined_call_operand.vmem [shape: bf16[128,128], index: 0, kind: input, shape index: {}]
  %s1 = inlined_call_operand.vmem [shape: bf16[128,128], index: 1, kind: input, shape index: {}]
  %s2 = inlined_call_operand.vmem [shape: bf16[128,128], index: 2, kind: input, shape index: {}]
  %s3 = inlined_call_operand.vmem [shape: f32[1,128], index: 3, kind: input, shape index: {}]
  %s4 = inlined_call_operand.vmem [shape: f32[128,128], index: 4, kind: output, shape index: {}]
  %s5 = sld [smem:[#allocation0]]
  $region34: #{gcn_forward.3} parent=0
    _
  %s7 = ssub.s32 1, %s5
  %s8 = scalar_select 0, %s7, %s5
  // Predicated region
  $region2: #{gcn_forward.3} parent=0 // pred_check
    _
  $region3: #{gcn_forward.3} parent=0 // pred_check_branch
    %10 = sbr.rel (0) target = $region5
  $region4: #{gcn_forward.3} parent=0 // pred_region
    _
  $region5: #{gcn_forward.3} parent=0 // pred_fallthru
    _
  // Predicated region
  $region6: #{gcn_forward.3} parent=0 // pred_check
    _
  $region7: #{gcn_forward.3} parent=0 // pred_check_branch
    %12 = sbr.rel (0) target = $region9
  $region8: #{gcn_forward.3} parent=0 // pred_region
    _
  $region9: #{gcn_forward.3} parent=0 // pred_fallthru
    _
  // Predicated region
  $region10: #{gcn_forward.3} parent=0 // pred_check
    _
  $region11: #{gcn_forward.3} parent=0 // pred_check_branch
    %14 = sbr.rel (0) target = $region13
  $region12: #{gcn_forward.3} parent=0 // pred_region
    _
  $region13: #{gcn_forward.3} parent=0 // pred_fallthru
    _
  // Predicated region
  $region14: #{gcn_forward.3} parent=0 // pred_check
    _
  $region15: #{gcn_forward.3} parent=0 // pred_check_branch
    %16 = sbr.rel (0) target = $region17
  $region16: #{gcn_forward.3} parent=0 // pred_region
    _
  $region17: #{gcn_forward.3} parent=0 // pred_fallthru
    _
  %p17 = scmp.eq.s32.totalorder 0, 0
  // Predicated region
  $region18: #{gcn_forward.3} parent=0 // pred_check
    %p18 = pneg %p17
  $region19: #{gcn_forward.3} parent=0 // pred_check_branch
    %20 = sbr.rel (%p18) target = $region21
  $region20: #{gcn_forward.3} parent=0 // pred_region
    %21 = vst [vmem:[#allocation2] sm:$0xff] 0.0
    %22 = vst [vmem:[#allocation2 + $0x8] sm:$0xff] 0.0
    %23 = vst [vmem:[#allocation2 + $0x10] sm:$0xff] 0.0
    %24 = vst [vmem:[#allocation2 + $0x18] sm:$0xff] 0.0
    %25 = vst [vmem:[#allocation2 + $0x20] sm:$0xff] 0.0
    %26 = vst [vmem:[#allocation2 + $0x28] sm:$0xff] 0.0
    %27 = vst [vmem:[#allocation2 + $0x30] sm:$0xff] 0.0
    %28 = vst [vmem:[#allocation2 + $0x38] sm:$0xff] 0.0
    %29 = vst [vmem:[#allocation2 + $0x40] sm:$0xff] 0.0
    %30 = vst [vmem:[#allocation2 + $0x48] sm:$0xff] 0.0
    %31 = vst [vmem:[#allocation2 + $0x50] sm:$0xff] 0.0
    %32 = vst [vmem:[#allocation2 + $0x58] sm:$0xff] 0.0
    %33 = vst [vmem:[#allocation2 + $0x60] sm:$0xff] 0.0
    %34 = vst [vmem:[#allocation2 + $0x68] sm:$0xff] 0.0
    %35 = vst [vmem:[#allocation2 + $0x70] sm:$0xff] 0.0
    %36 = vst [vmem:[#allocation2 + $0x78] sm:$0xff] 0.0
  $region21: #{gcn_forward.3} parent=0 // pred_fallthru
    _
  %v37 = vld [vmem:[#allocation2] sm:$0xff]
  %v38 = vld [vmem:[#allocation2 + $0x8] sm:$0xff]
  %v39 = vld [vmem:[#allocation2 + $0x10] sm:$0xff]
  %v40 = vld [vmem:[#allocation2 + $0x18] sm:$0xff]
  %v41 = vld [vmem:[#allocation2 + $0x20] sm:$0xff]
  %v42 = vld [vmem:[#allocation2 + $0x28] sm:$0xff]
  %v43 = vld [vmem:[#allocation2 + $0x30] sm:$0xff]
  %v44 = vld [vmem:[#allocation2 + $0x38] sm:$0xff]
  %v45 = vld [vmem:[#allocation2 + $0x40] sm:$0xff]
  %v46 = vld [vmem:[#allocation2 + $0x48] sm:$0xff]
  %v47 = vld [vmem:[#allocation2 + $0x50] sm:$0xff]
  %v48 = vld [vmem:[#allocation2 + $0x58] sm:$0xff]
  %v49 = vld [vmem:[#allocation2 + $0x60] sm:$0xff]
  %v50 = vld [vmem:[#allocation2 + $0x68] sm:$0xff]
  %v51 = vld [vmem:[#allocation2 + $0x70] sm:$0xff]
  %v52 = vld [vmem:[#allocation2 + $0x78] sm:$0xff]
  %v53 = vld [vmem:[%s0] sm:$0xf]
  %v54 = vld [vmem:[%s0 + $0x4] sm:$0xf]
  %v55 = vld [vmem:[%s0 + $0x8] sm:$0xf]
  %v56 = vld [vmem:[%s0 + $0xc] sm:$0xf]
  %v57 = vld [vmem:[%s0 + $0x10] sm:$0xf]
  %v58 = vld [vmem:[%s0 + $0x14] sm:$0xf]
  %v59 = vld [vmem:[%s0 + $0x18] sm:$0xf]
  %v60 = vld [vmem:[%s0 + $0x1c] sm:$0xf]
  %v61 = vld [vmem:[%s0 + $0x20] sm:$0xf]
  %v62 = vld [vmem:[%s0 + $0x24] sm:$0xf]
  %v63 = vld [vmem:[%s0 + $0x28] sm:$0xf]
  %v64 = vld [vmem:[%s0 + $0x2c] sm:$0xf]
  %v65 = vld [vmem:[%s0 + $0x30] sm:$0xf]
  %v66 = vld [vmem:[%s0 + $0x34] sm:$0xf]
  %v67 = vld [vmem:[%s0 + $0x38] sm:$0xf]
  %v68 = vld [vmem:[%s0 + $0x3c] sm:$0xf]
  %v69 = vld [vmem:[%s1] sm:$0xf]
  %v70 = vld [vmem:[%s1 + $0x4] sm:$0xf]
  %v71 = vld [vmem:[%s1 + $0x8] sm:$0xf]
  %v72 = vld [vmem:[%s1 + $0xc] sm:$0xf]
  %v73 = vld [vmem:[%s1 + $0x10] sm:$0xf]
  %v74 = vld [vmem:[%s1 + $0x14] sm:$0xf]
  %v75 = vld [vmem:[%s1 + $0x18] sm:$0xf]
  %v76 = vld [vmem:[%s1 + $0x1c] sm:$0xf]
  %v77 = vld [vmem:[%s1 + $0x20] sm:$0xf]
  %v78 = vld [vmem:[%s1 + $0x24] sm:$0xf]
  %v79 = vld [vmem:[%s1 + $0x28] sm:$0xf]
  %v80 = vld [vmem:[%s1 + $0x2c] sm:$0xf]
  %v81 = vld [vmem:[%s1 + $0x30] sm:$0xf]
  %v82 = vld [vmem:[%s1 + $0x34] sm:$0xf]
  %v83 = vld [vmem:[%s1 + $0x38] sm:$0xf]
  %v84 = vld [vmem:[%s1 + $0x3c] sm:$0xf]
  %v101 = vunpack.c.l.b16 %v53
  %v102 = vunpack.c.l.b16 %v54
  %v103 = vunpack.c.l.b16 %v55
  %v104 = vunpack.c.l.b16 %v56
  %v105 = vunpack.c.l.b16 %v57
  %v106 = vunpack.c.l.b16 %v58
  %v107 = vunpack.c.l.b16 %v59
  %v108 = vunpack.c.l.b16 %v60
  %v109 = vunpack.c.l.b16 %v61
  %v110 = vunpack.c.l.b16 %v62
  %v111 = vunpack.c.l.b16 %v63
  %v112 = vunpack.c.l.b16 %v64
  %v113 = vunpack.c.l.b16 %v65
  %v114 = vunpack.c.l.b16 %v66
  %v115 = vunpack.c.l.b16 %v67
  %v116 = vunpack.c.l.b16 %v68
  %v117 = vpack.c.b16 %v102, %v101
  %v118 = vpack.c.b16 %v104, %v103
  %v119 = vpack.c.b16 %v106, %v105
  %v120 = vpack.c.b16 %v108, %v107
  %v121 = vpack.c.b16 %v110, %v109
  %v122 = vpack.c.b16 %v112, %v111
  %v123 = vpack.c.b16 %v114, %v113
  %v124 = vpack.c.b16 %v116, %v115
  %v149 = vunpack.c.l.b16 %v69
  %v150 = vunpack.c.l.b16 %v70
  %v151 = vunpack.c.l.b16 %v71
  %v152 = vunpack.c.l.b16 %v72
  %v153 = vunpack.c.l.b16 %v73
  %v154 = vunpack.c.l.b16 %v74
  %v155 = vunpack.c.l.b16 %v75
  %v156 = vunpack.c.l.b16 %v76
  %v157 = vunpack.c.l.b16 %v77
  %v158 = vunpack.c.l.b16 %v78
  %v159 = vunpack.c.l.b16 %v79
  %v160 = vunpack.c.l.b16 %v80
  %v161 = vunpack.c.l.b16 %v81
  %v162 = vunpack.c.l.b16 %v82
  %v163 = vunpack.c.l.b16 %v83
  %v164 = vunpack.c.l.b16 %v84
  %v165 = vpack.c.b16 %v150, %v149
  %v166 = vpack.c.b16 %v152, %v151
  %v167 = vpack.c.b16 %v154, %v153
  %v168 = vpack.c.b16 %v156, %v155
  %v169 = vpack.c.b16 %v158, %v157
  %v170 = vpack.c.b16 %v160, %v159
  %v171 = vpack.c.b16 %v162, %v161
  %v172 = vpack.c.b16 %v164, %v163
  %181 = vmatpush.bf16.msra.mxu0 %v172
  %182 = vmatpush.bf16.msra.mxu0 %v171
  %183 = vmatpush.bf16.msra.mxu0 %v170
  %184 = vmatpush.bf16.msra.mxu0 %v169
  %185 = vmatpush.bf16.msra.mxu0 %v168
  %186 = vmatpush.bf16.msra.mxu0 %v167
  %187 = vmatpush.bf16.msra.mxu0 %v166
  %188 = vmatpush.bf16.msra.mxu0 %v165
  %189 = vmatmul.bf16.gmra.mxu0 %v117
  %v190 = vpop.f32.mrf.mxu0
  %v191 = vadd.f32 0.0, %v190
  %v192 = vpop.f32.mrf.mxu0
  %v193 = vadd.f32 0.0, %v192
  %194 = vmatmul.bf16.gmra.mxu0 %v118
  %v195 = vpop.f32.mrf.mxu0
  %v196 = vadd.f32 0.0, %v195
  %v197 = vpop.f32.mrf.mxu0
  %v198 = vadd.f32 0.0, %v197
  %199 = vmatmul.bf16.gmra.mxu0 %v119
  %v200 = vpop.f32.mrf.mxu0
  %v201 = vadd.f32 0.0, %v200
  %v202 = vpop.f32.mrf.mxu0
  %v203 = vadd.f32 0.0, %v202
  %204 = vmatmul.bf16.gmra.mxu0 %v120
  %v205 = vpop.f32.mrf.mxu0
  %v206 = vadd.f32 0.0, %v205
  %v207 = vpop.f32.mrf.mxu0
  %v208 = vadd.f32 0.0, %v207
  %209 = vmatmul.bf16.gmra.mxu0 %v121
  %v210 = vpop.f32.mrf.mxu0
  %v211 = vadd.f32 0.0, %v210
  %v212 = vpop.f32.mrf.mxu0
  %v213 = vadd.f32 0.0, %v212
  %214 = vmatmul.bf16.gmra.mxu0 %v122
  %v215 = vpop.f32.mrf.mxu0
  %v216 = vadd.f32 0.0, %v215
  %v217 = vpop.f32.mrf.mxu0
  %v218 = vadd.f32 0.0, %v217
  %219 = vmatmul.bf16.gmra.mxu0 %v123
  %v220 = vpop.f32.mrf.mxu0
  %v221 = vadd.f32 0.0, %v220
  %v222 = vpop.f32.mrf.mxu0
  %v223 = vadd.f32 0.0, %v222
  %224 = vmatmul.bf16.gmra.mxu0 %v124
  %v225 = vpop.f32.mrf.mxu0
  %v226 = vadd.f32 0.0, %v225
  %v227 = vpop.f32.mrf.mxu0
  %v228 = vadd.f32 0.0, %v227
  %229 = vdwg.mxu0
  %v230 = vadd.f32 %v37, %v191
  %v231 = vadd.f32 %v38, %v193
  %v232 = vadd.f32 %v39, %v196
  %v233 = vadd.f32 %v40, %v198
  %v234 = vadd.f32 %v41, %v201
  %v235 = vadd.f32 %v42, %v203
  %v236 = vadd.f32 %v43, %v206
  %v237 = vadd.f32 %v44, %v208
  %v238 = vadd.f32 %v45, %v211
  %v239 = vadd.f32 %v46, %v213
  %v240 = vadd.f32 %v47, %v216
  %v241 = vadd.f32 %v48, %v218
  %v242 = vadd.f32 %v49, %v221
  %v243 = vadd.f32 %v50, %v223
  %v244 = vadd.f32 %v51, %v226
  %v245 = vadd.f32 %v52, %v228
  %246 = vst [vmem:[#allocation2] sm:$0xff] %v230
  %247 = vst [vmem:[#allocation2 + $0x8] sm:$0xff] %v231
  %248 = vst [vmem:[#allocation2 + $0x10] sm:$0xff] %v232
  %249 = vst [vmem:[#allocation2 + $0x18] sm:$0xff] %v233
  %250 = vst [vmem:[#allocation2 + $0x20] sm:$0xff] %v234
  %251 = vst [vmem:[#allocation2 + $0x28] sm:$0xff] %v235
  %252 = vst [vmem:[#allocation2 + $0x30] sm:$0xff] %v236
  %253 = vst [vmem:[#allocation2 + $0x38] sm:$0xff] %v237
  %254 = vst [vmem:[#allocation2 + $0x40] sm:$0xff] %v238
  %255 = vst [vmem:[#allocation2 + $0x48] sm:$0xff] %v239
  %256 = vst [vmem:[#allocation2 + $0x50] sm:$0xff] %v240
  %257 = vst [vmem:[#allocation2 + $0x58] sm:$0xff] %v241
  %258 = vst [vmem:[#allocation2 + $0x60] sm:$0xff] %v242
  %259 = vst [vmem:[#allocation2 + $0x68] sm:$0xff] %v243
  %260 = vst [vmem:[#allocation2 + $0x70] sm:$0xff] %v244
  %261 = vst [vmem:[#allocation2 + $0x78] sm:$0xff] %v245
  // Predicated region
  $region22: #{gcn_forward.3} parent=0 // pred_check
    %p262 = pneg %p17
  $region23: #{gcn_forward.3} parent=0 // pred_check_branch
    %264 = sbr.rel (%p262) target = $region25
  $region24: #{gcn_forward.3} parent=0 // pred_region
    %v265 = vld [vmem:[#allocation2] sm:$0xff]
    %v266 = vld [vmem:[#allocation2 + $0x8] sm:$0xff]
    %v267 = vld [vmem:[#allocation2 + $0x10] sm:$0xff]
    %v268 = vld [vmem:[#allocation2 + $0x18] sm:$0xff]
    %v269 = vld [vmem:[#allocation2 + $0x20] sm:$0xff]
    %v270 = vld [vmem:[#allocation2 + $0x28] sm:$0xff]
    %v271 = vld [vmem:[#allocation2 + $0x30] sm:$0xff]
    %v272 = vld [vmem:[#allocation2 + $0x38] sm:$0xff]
    %v273 = vld [vmem:[#allocation2 + $0x40] sm:$0xff]
    %v274 = vld [vmem:[#allocation2 + $0x48] sm:$0xff]
    %v275 = vld [vmem:[#allocation2 + $0x50] sm:$0xff]
    %v276 = vld [vmem:[#allocation2 + $0x58] sm:$0xff]
    %v277 = vld [vmem:[#allocation2 + $0x60] sm:$0xff]
    %v278 = vld [vmem:[#allocation2 + $0x68] sm:$0xff]
    %v279 = vld [vmem:[#allocation2 + $0x70] sm:$0xff]
    %v280 = vld [vmem:[#allocation2 + $0x78] sm:$0xff]
    %v281 = vpack.c.bf16 %v266, %v265
    %v282 = vpack.c.bf16 %v268, %v267
    %v283 = vpack.c.bf16 %v270, %v269
    %v284 = vpack.c.bf16 %v272, %v271
    %v285 = vpack.c.bf16 %v274, %v273
    %v286 = vpack.c.bf16 %v276, %v275
    %v287 = vpack.c.bf16 %v278, %v277
    %v288 = vpack.c.bf16 %v280, %v279
    %v289 = vld [vmem:[%s2] sm:$0xf]
    %v290 = vld [vmem:[%s2 + $0x4] sm:$0xf]
    %v291 = vld [vmem:[%s2 + $0x8] sm:$0xf]
    %v292 = vld [vmem:[%s2 + $0xc] sm:$0xf]
    %v293 = vld [vmem:[%s2 + $0x10] sm:$0xf]
    %v294 = vld [vmem:[%s2 + $0x14] sm:$0xf]
    %v295 = vld [vmem:[%s2 + $0x18] sm:$0xf]
    %v296 = vld [vmem:[%s2 + $0x1c] sm:$0xf]
    %v297 = vld [vmem:[%s2 + $0x20] sm:$0xf]
    %v298 = vld [vmem:[%s2 + $0x24] sm:$0xf]
    %v299 = vld [vmem:[%s2 + $0x28] sm:$0xf]
    %v300 = vld [vmem:[%s2 + $0x2c] sm:$0xf]
    %v301 = vld [vmem:[%s2 + $0x30] sm:$0xf]
    %v302 = vld [vmem:[%s2 + $0x34] sm:$0xf]
    %v303 = vld [vmem:[%s2 + $0x38] sm:$0xf]
    %v304 = vld [vmem:[%s2 + $0x3c] sm:$0xf]
    %v305 = vld [vmem:[%s3] sm:$0x1]
    %v307 = vperm.slane %v305, 0
    %v325 = vunpack.c.l.b16 %v289
    %v326 = vunpack.c.l.b16 %v290
    %v327 = vunpack.c.l.b16 %v291
    %v328 = vunpack.c.l.b16 %v292
    %v329 = vunpack.c.l.b16 %v293
    %v330 = vunpack.c.l.b16 %v294
    %v331 = vunpack.c.l.b16 %v295
    %v332 = vunpack.c.l.b16 %v296
    %v333 = vunpack.c.l.b16 %v297
    %v334 = vunpack.c.l.b16 %v298
    %v335 = vunpack.c.l.b16 %v299
    %v336 = vunpack.c.l.b16 %v300
    %v337 = vunpack.c.l.b16 %v301
    %v338 = vunpack.c.l.b16 %v302
    %v339 = vunpack.c.l.b16 %v303
    %v340 = vunpack.c.l.b16 %v304
    %v341 = vpack.c.b16 %v326, %v325
    %v342 = vpack.c.b16 %v328, %v327
    %v343 = vpack.c.b16 %v330, %v329
    %v344 = vpack.c.b16 %v332, %v331
    %v345 = vpack.c.b16 %v334, %v333
    %v346 = vpack.c.b16 %v336, %v335
    %v347 = vpack.c.b16 %v338, %v337
    %v348 = vpack.c.b16 %v340, %v339
    %357 = vmatpush.bf16.msra.mxu0 %v348
    %358 = vmatpush.bf16.msra.mxu0 %v347
    %359 = vmatpush.bf16.msra.mxu0 %v346
    %360 = vmatpush.bf16.msra.mxu0 %v345
    %361 = vmatpush.bf16.msra.mxu0 %v344
    %362 = vmatpush.bf16.msra.mxu0 %v343
    %363 = vmatpush.bf16.msra.mxu0 %v342
    %364 = vmatpush.bf16.msra.mxu0 %v341
    %365 = vmatmul.bf16.gmra.mxu0 %v281
    %v366 = vpop.f32.mrf.mxu0
    %v367 = vadd.f32 %v307, %v366
    %v368 = vpop.f32.mrf.mxu0
    %v369 = vadd.f32 %v307, %v368
    %370 = vmatmul.bf16.gmra.mxu0 %v282
    %v371 = vpop.f32.mrf.mxu0
    %v372 = vadd.f32 %v307, %v371
    %v373 = vpop.f32.mrf.mxu0
    %v374 = vadd.f32 %v307, %v373
    %375 = vmatmul.bf16.gmra.mxu0 %v283
    %v376 = vpop.f32.mrf.mxu0
    %v377 = vadd.f32 %v307, %v376
    %v378 = vpop.f32.mrf.mxu0
    %v379 = vadd.f32 %v307, %v378
    %380 = vmatmul.bf16.gmra.mxu0 %v284
    %v381 = vpop.f32.mrf.mxu0
    %v382 = vadd.f32 %v307, %v381
    %v383 = vpop.f32.mrf.mxu0
    %v384 = vadd.f32 %v307, %v383
    %385 = vmatmul.bf16.gmra.mxu0 %v285
    %v386 = vpop.f32.mrf.mxu0
    %v387 = vadd.f32 %v307, %v386
    %v388 = vpop.f32.mrf.mxu0
    %v389 = vadd.f32 %v307, %v388
    %390 = vmatmul.bf16.gmra.mxu0 %v286
    %v391 = vpop.f32.mrf.mxu0
    %v392 = vadd.f32 %v307, %v391
    %v393 = vpop.f32.mrf.mxu0
    %v394 = vadd.f32 %v307, %v393
    %395 = vmatmul.bf16.gmra.mxu0 %v287
    %v396 = vpop.f32.mrf.mxu0
    %v397 = vadd.f32 %v307, %v396
    %v398 = vpop.f32.mrf.mxu0
    %v399 = vadd.f32 %v307, %v398
    %400 = vmatmul.bf16.gmra.mxu0 %v288
    %v401 = vpop.f32.mrf.mxu0
    %v402 = vadd.f32 %v307, %v401
    %v403 = vpop.f32.mrf.mxu0
    %v404 = vadd.f32 %v307, %v403
    %405 = vdwg.mxu0
    %406 = vst [vmem:[%s4] sm:$0xff] %v367
    %407 = vst [vmem:[%s4 + $0x8] sm:$0xff] %v369
    %408 = vst [vmem:[%s4 + $0x10] sm:$0xff] %v372
    %409 = vst [vmem:[%s4 + $0x18] sm:$0xff] %v374
    %410 = vst [vmem:[%s4 + $0x20] sm:$0xff] %v377
    %411 = vst [vmem:[%s4 + $0x28] sm:$0xff] %v379
    %412 = vst [vmem:[%s4 + $0x30] sm:$0xff] %v382
    %413 = vst [vmem:[%s4 + $0x38] sm:$0xff] %v384
    %414 = vst [vmem:[%s4 + $0x40] sm:$0xff] %v387
    %415 = vst [vmem:[%s4 + $0x48] sm:$0xff] %v389
    %416 = vst [vmem:[%s4 + $0x50] sm:$0xff] %v392
    %417 = vst [vmem:[%s4 + $0x58] sm:$0xff] %v394
    %418 = vst [vmem:[%s4 + $0x60] sm:$0xff] %v397
    %419 = vst [vmem:[%s4 + $0x68] sm:$0xff] %v399
    %420 = vst [vmem:[%s4 + $0x70] sm:$0xff] %v402
    %421 = vst [vmem:[%s4 + $0x78] sm:$0xff] %v404
  $region25: #{gcn_forward.3} parent=0 // pred_fallthru
    _
  // Predicated region
  $region26: #{gcn_forward.3} parent=0 // pred_check
    _
  $region27: #{gcn_forward.3} parent=0 // pred_check_branch
    %423 = sbr.rel (0) target = $region29
  $region28: #{gcn_forward.3} parent=0 // pred_region
    _
  $region29: #{gcn_forward.3} parent=0 // pred_fallthru
    _
  // Predicated region
  $region30: #{gcn_forward.3} parent=0 // pred_check
    _
  $region31: #{gcn_forward.3} parent=0 // pred_check_branch
    %425 = sbr.rel (0) target = $region33
  $region32: #{gcn_forward.3} parent=0 // pred_region
    _
  $region33: #{gcn_forward.3} parent=0 // pred_fallthru
    _

</llo_original>
